<compile_context>
chip_gen: v6e
topology: v6e:2x2x1
jax: 0.10.0
libtpu: 0.0.40
codegen_flags: <defaults>
</compile_context>

<pallas_src>
import numpy as np
import jax
import jax.numpy as jnp
from jax.experimental import pallas as pl
from jax.experimental.pallas import tpu as pltpu

CAM_VIEWS = ("Dashboard", "Right_side_window", "Rear_view")


def _add_prompt_kernel(x_ref, p_ref, o_ref):
    # x_ref / o_ref: (bc_blk, T, S*S)   p_ref: (bc_blk, 1, S*S)
    # Single full-tile add; the prompt broadcasts over the sublane (T) axis.
    o_ref[...] = x_ref[...] + p_ref[...]


def _choose_bc_block(bc_total, bytes_per_slab, target_bytes=2 << 20):
    """Largest divisor of bc_total whose block stays under ~target_bytes,
    keeping >= 2 grid steps (when possible) so v7x megacore has work to split."""
    best = 1
    for d in range(1, bc_total + 1):
        if bc_total % d != 0:
            continue
        if d > 1 and d * bytes_per_slab > target_bytes:
            continue
        if bc_total >= 2 and bc_total // d < 2:
            continue
        best = d
    return best


def add_prompt(x, prompt):
    """x: [B, C, T, S, S]; prompt: [B, C, S, S]. Returns x + prompt broadcast over T."""
    B, C, T, S, S2 = x.shape
    assert S == S2 and prompt.shape == (B, C, S, S)
    L = S * S
    BC = B * C
    x3 = x.reshape(BC, T, L)                       # lane-dense slab, last dim = S*S
    p3 = prompt.astype(x.dtype).reshape(BC, 1, L)

    bc_blk = _choose_bc_block(BC, T * L * x.dtype.itemsize)
    grid = (BC // bc_blk,)

    out = pl.pallas_call(
        _add_prompt_kernel,
        out_shape=jax.ShapeDtypeStruct((BC, T, L), x.dtype),
        grid_spec=pltpu.PrefetchScalarGridSpec(
            num_scalar_prefetch=0,
            grid=grid,
            in_specs=[
                pl.BlockSpec((bc_blk, T, L), lambda i: (i, 0, 0)),
                pl.BlockSpec((bc_blk, 1, L), lambda i: (i, 0, 0)),
            ],
            out_specs=pl.BlockSpec((bc_blk, T, L), lambda i: (i, 0, 0)),
        ),
        compiler_params=pltpu.CompilerParams(
            dimension_semantics=("parallel",),
            vmem_limit_bytes=32 * 1024 * 1024,
        ),
    )(x3, p3)
    return out.reshape(B, C, T, S, S)


def _resize_bilinear(p, new_hw):
    # torch F.interpolate(mode='bilinear', align_corners=False) analogue.
    c, one, _, _ = p.shape
    return jax.image.resize(p, (c, one, new_hw[0], new_hw[1]),
                            method="bilinear", antialias=False)


def build_prompt(params, cam_views, offsets, image_size, max_pad_size):
    """Assemble per-clip [3, S, S] prompts → [B, 3, S, S]  (plain-JAX glue).

    params: params[kind][view] for kind in pad_up / pad_down / pad_left / pad_right.
    offsets: list of (offset_right, offset_down) Python ints per clip (host RNG,
             like np.random.randint in the PyTorch module — sizes must be static).
    """
    crop = image_size - 2 * max_pad_size
    clip_prompts = []
    for view, (off_r, off_d) in zip(cam_views, offsets):
        off_l = 2 * max_pad_size - off_r
        off_u = 2 * max_pad_size - off_d
        left = _resize_bilinear(params["pad_left"][view], (crop, off_l))
        right = _resize_bilinear(params["pad_right"][view], (crop, off_r))
        up = _resize_bilinear(params["pad_up"][view], (off_u, image_size))
        down = _resize_bilinear(params["pad_down"][view], (off_d, image_size))
        base = jnp.zeros((3, 1, crop, crop), dtype=left.dtype)
        mid = jnp.concatenate([left, base, right], axis=3)        # [3,1,crop,S]
        frame = jnp.concatenate([up, mid, down], axis=2)          # [3,1,S,S]
        clip_prompts.append(frame[:, 0])                          # [3,S,S]
    return jnp.stack(clip_prompts, axis=0)                        # [B,3,S,S]


def multicam_noise_crop_v3_forward(x, params, cam_views, offsets,
                                   image_size, max_pad_size):
    # TODO(synk): per-clip host RNG (np.random.randint), string-keyed ParameterDict
    # lookup and dynamic-size bilinear interpolation have no Pallas equivalent; they
    # run as tiny plain-JAX/NumPy glue building the [B,3,S,S] prompt. The hot
    # broadcast-add over [B,3,T,S,S] runs in the Pallas kernel.
    prompt = build_prompt(params, cam_views, offsets, image_size, max_pad_size)
    return [add_prompt(x, prompt)]


if __name__ == "__main__":
    B, C, T = 2, 3, 4
    image_size, max_pad_size = 16, 4
    crop = image_size - 2 * max_pad_size

    key = jax.random.PRNGKey(0)
    kx, *pkeys = jax.random.split(key, 1 + 12)

    x = jax.random.normal(kx, (B, C, T, image_size, image_size), dtype=jnp.float32)

    shapes = {
        "pad_up": (3, 1, 2 * max_pad_size, image_size),
        "pad_down": (3, 1, max_pad_size, image_size),
        "pad_left": (3, 1, crop, 2 * max_pad_size),
        "pad_right": (3, 1, crop, max_pad_size),
    }
    params = {}
    ki = iter(pkeys)
    for kind, shp in shapes.items():
        params[kind] = {view: jax.random.normal(next(ki), shp, dtype=jnp.float32)
                        for view in CAM_VIEWS}

    cam_views = ["Dashboard", "Rear_view"]             # one per clip (len == B)
    rng = np.random.default_rng(0)                     # host RNG, mirrors np.random.randint
    offsets = [(int(rng.integers(1, max_pad_size + 1)),
                int(rng.integers(1, max_pad_size + 1))) for _ in range(B)]

    out = multicam_noise_crop_v3_forward(x, params, cam_views, offsets,
                                         image_size, max_pad_size)[0]
    jax.block_until_ready(out)

    # Plain-JAX reference for the kernel portion (prompt broadcast-add over T).
    prompt = build_prompt(params, cam_views, offsets, image_size, max_pad_size)
    ref = x + prompt[:, :, None, :, :]
    assert out.shape == ref.shape
    assert jnp.allclose(out, ref, atol=1e-6), "mismatch vs reference"

    print("KERNEL_OK")
</pallas_src>

<mosaic_0001>
module attributes {stable_mosaic.version = 11 : i64} {
  func.func @_add_prompt_kernel(%arg0: i32, %arg1: memref<3x4x256xf32, #tpu.memory_space<vmem>>, %arg2: memref<3x1x256xf32, #tpu.memory_space<vmem>>, %arg3: memref<3x4x256xf32, #tpu.memory_space<vmem>>) attributes {dimension_semantics = [#tpu.dimension_semantics<parallel>], iteration_bounds = array<i64: 2>, scalar_prefetch = 0 : i64, scratch_operands = 0 : i64, tpu.core_type = #tpu.core_type<tc>, window_params = [{transform_indices = @transform_0, window_bounds = array<i64: 3, 4, 256>}, {transform_indices = @transform_1, window_bounds = array<i64: 3, 1, 256>}, {transform_indices = @transform_2, window_bounds = array<i64: 3, 4, 256>}]} {
    %c0 = arith.constant 0 : index
    %c0_0 = arith.constant 0 : index
    %c0_1 = arith.constant 0 : index
    %0 = vector.load %arg1[%c0, %c0_0, %c0_1] : memref<3x4x256xf32, #tpu.memory_space<vmem>>, vector<3x4x256xf32>
    %c0_2 = arith.constant 0 : index
    %c0_3 = arith.constant 0 : index
    %c0_4 = arith.constant 0 : index
    %1 = vector.load %arg2[%c0_2, %c0_3, %c0_4] : memref<3x1x256xf32, #tpu.memory_space<vmem>>, vector<3x1x256xf32>
    %2 = vector.broadcast %1 : vector<3x1x256xf32> to vector<3x4x256xf32>
    %3 = arith.addf %0, %2 : vector<3x4x256xf32>
    %c0_5 = arith.constant 0 : index
    %c0_6 = arith.constant 0 : index
    %c0_7 = arith.constant 0 : index
    %4 = vector.load %arg3[%c0_5, %c0_6, %c0_7] : memref<3x4x256xf32, #tpu.memory_space<vmem>>, vector<3x4x256xf32>
    tpu.vector_store %arg3[%c0_5, %c0_6, %c0_7], %3 {strides = array<i32>} : memref<3x4x256xf32, #tpu.memory_space<vmem>>, vector<3x4x256xf32>,
    return
  }
  func.func @transform_0(%arg0: i32) -> (i32, i32, i32) {
    %c0_i32 = arith.constant 0 : i32
    %c0_i32_0 = arith.constant 0 : i32
    %c0_i32_1 = arith.constant 0 : i32
    return %arg0, %c0_i32, %c0_i32_0 : i32, i32, i32
  }
  func.func @transform_1(%arg0: i32) -> (i32, i32, i32) {
    %c0_i32 = arith.constant 0 : i32
    %c0_i32_0 = arith.constant 0 : i32
    %c0_i32_1 = arith.constant 0 : i32
    return %arg0, %c0_i32, %c0_i32_0 : i32, i32, i32
  }
  func.func @transform_2(%arg0: i32) -> (i32, i32, i32) {
    %c0_i32 = arith.constant 0 : i32
    %c0_i32_0 = arith.constant 0 : i32
    %c0_i32_1 = arith.constant 0 : i32
    return %arg0, %c0_i32, %c0_i32_0 : i32, i32, i32
  }
}

</mosaic_0001>

<llo_original>
// kernel: tpu_custom_call.1
$region0: #{tpu_custom_call.1}
  #allocation0 [shape = 'u32[]', space=smem, size = 0x4, offset = 0x4, fixed_abs, tag = 'smem constant byte address 0x4 - core index']
  #allocation1 [shape = 'u32[144,128]{1,0:T(1,128)}', space=vmem, size = 0x12000, scoped, tag = 'internal scratch']
  %s0 = inlined_call_operand.hbm [shape: f32[6,4,256], index: 0, kind: input, shape index: {}]
  %s1 = inlined_call_operand.hbm [shape: f32[6,1,256], index: 1, kind: input, shape index: {}]
  %s2 = inlined_call_operand.hbm [shape: f32[6,4,256], index: 2, kind: output, shape index: {}]
  %s3 = sld [smem:[#allocation0]]
  $region49: #{tpu_custom_call.1} parent=0
    _
  %s5 = ssub.s32 1, %s3
  %s6 = scalar_select 0, %s5, %s3
  $region1: #{tpu_custom_call.1} parent=0
    #allocation2 [shape = 'u8[24576]{0}', space=vmem, size = 0x6000, scoped, tag = 'input window, operand 0']
    #allocation3 [shape = 's32[2]{0}', space=sflag, size = 0x8, scoped, tag = 'scoped memory for tpu_custom_call.1']
    #allocation4 [shape = 's32[2]{0}', space=sflag, size = 0x8, scoped, tag = 'scoped memory for tpu_custom_call.1']
    #allocation5 [shape = 'u8[6144]{0}', space=vmem, size = 0x1800, scoped, tag = 'input window, operand 1']
    #allocation6 [shape = 's32[2]{0}', space=sflag, size = 0x8, scoped, tag = 'scoped memory for tpu_custom_call.1']
    #allocation7 [shape = 'u8[24576]{0}', space=vmem, size = 0x6000, scoped, tag = 'output window, operand 0']
    %7 = vsyncpa [#allocation3], 0
    %s8 = scalar_lea.sflag [#allocation3], 1
    %9 = vsyncpa %s8, 0
    %10 = vsyncpa [#allocation6], 0
    %s11 = scalar_lea.sflag [#allocation6], 1
    %12 = vsyncpa %s11, 0
    %13 = vsyncpa [#allocation4], 0
    %s14 = scalar_lea.sflag [#allocation4], 1
    %15 = vsyncpa %s14, 0
    loop: start=0, step=1, limit=4
    $region2: #{tpu_custom_call.1} parent=1 // loop_pre_header
      _
    $region3: #{tpu_custom_call.1} parent=1 // loop_header
      %s17 = sphi 0, %s21
      %p18 = scmp.ge.s32.totalorder %s17, 4
      %s27 = sphi 0, %s29
      %s30 = sphi 0, %s27
      %s31 = sphi 0, %s30
      %s47 = sphi 0, %s31
      %s53 = sphi 0, %s55
      %s56 = sphi 0, %s53
      %s57 = sphi 0, %s56
      %s73 = sphi 0, %s57
      %s79 = sphi 0, %s81
      %s82 = sphi 0, %s79
      %s83 = sphi 0, %s82
      %s99 = sphi 0, %s83
    $region4: #{tpu_custom_call.1} parent=1 // loop_header_branch
      %20 = sbr.rel (%p18) target = $region8
    $region5: #{tpu_custom_call.1} parent=1 // loop_body
      %s22 = ssub.s32 %s17, 1
      %s23 = ssub.s32 %s17, 2
      %s24 = sadd.s32 %s17, 1
      %s25 = ssub.s32 %s17, %s24
      %p26 = scmp.eq.s32.totalorder %s25, 0
      %s28 = sadd.s32 %s27, 1
      %s29 = scalar_select %p26, %s27, %s28
      %p32 = pneg %p26
      %p33 = scmp.eq.s32.totalorder %s17, 1
      %p34 = por %p32, %p33
      %p35 = scmp.ne.s32.totalorder %s27, %s30
      %p36 = scmp.eq.s32.totalorder %s17, 0
      %p37 = por %p35, %p36
      %p38 = scmp.ne.s32.totalorder %s27, %s30
      %p39 = scmp.eq.s32.totalorder %s22, 1
      %p40 = por %p38, %p39
      %p41 = scmp.ne.s32.totalorder %s30, %s31
      %p42 = scmp.eq.s32.totalorder %s22, 0
      %p43 = por %p41, %p42
      %p44 = scmp.ne.s32.totalorder %s30, %s31
      %p45 = scmp.eq.s32.totalorder %s23, 1
      %p46 = por %p44, %p45
      %p48 = scmp.ne.s32.totalorder %s31, %s47
      %p49 = scmp.eq.s32.totalorder %s23, 0
      %p50 = por %p48, %p49
      %s51 = ssub.s32 %s17, %s24
      %p52 = scmp.eq.s32.totalorder %s51, 0
      %s54 = sadd.s32 %s53, 1
      %s55 = scalar_select %p52, %s53, %s54
      %p58 = pneg %p52
      %p59 = scmp.eq.s32.totalorder %s17, 1
      %p60 = por %p58, %p59
      %p61 = scmp.ne.s32.totalorder %s53, %s56
      %p62 = scmp.eq.s32.totalorder %s17, 0
      %p63 = por %p61, %p62
      %p64 = scmp.ne.s32.totalorder %s53, %s56
      %p65 = scmp.eq.s32.totalorder %s22, 1
      %p66 = por %p64, %p65
      %p67 = scmp.ne.s32.totalorder %s56, %s57
      %p68 = scmp.eq.s32.totalorder %s22, 0
      %p69 = por %p67, %p68
      %p70 = scmp.ne.s32.totalorder %s56, %s57
      %p71 = scmp.eq.s32.totalorder %s23, 1
      %p72 = por %p70, %p71
      %p74 = scmp.ne.s32.totalorder %s57, %s73
      %p75 = scmp.eq.s32.totalorder %s23, 0
      %p76 = por %p74, %p75
      %s77 = ssub.s32 %s17, %s24
      %p78 = scmp.eq.s32.totalorder %s77, 0
      %s80 = sadd.s32 %s79, 1
      %s81 = scalar_select %p78, %s79, %s80
      %p84 = pneg %p78
      %p85 = scmp.eq.s32.totalorder %s17, 1
      %p86 = por %p84, %p85
      %p87 = scmp.ne.s32.totalorder %s79, %s82
      %p88 = scmp.eq.s32.totalorder %s17, 0
      %p89 = por %p87, %p88
      %p90 = scmp.ne.s32.totalorder %s79, %s82
      %p91 = scmp.eq.s32.totalorder %s22, 1
      %p92 = por %p90, %p91
      %p93 = scmp.ne.s32.totalorder %s82, %s83
      %p94 = scmp.eq.s32.totalorder %s22, 0
      %p95 = por %p93, %p94
      %p96 = scmp.ne.s32.totalorder %s82, %s83
      %p97 = scmp.eq.s32.totalorder %s23, 1
      %p98 = por %p96, %p97
      %p100 = scmp.ne.s32.totalorder %s83, %s99
      %p101 = scmp.eq.s32.totalorder %s23, 0
      %p102 = por %p100, %p101
      %p103 = scmp.le.s32.totalorder 1, %s17
      %p104 = scmp.lt.s32.totalorder %s17, 3
      %p105 = pnand %p103, %p104
      %p106 = pneg %p105
      // Predicated region
      $region9: #{tpu_custom_call.1} parent=5 // pred_check
        _
      $region10: #{tpu_custom_call.1} parent=5 // pred_check_branch
        %108 = sbr.rel (%p105) target = $region12
      $region11: #{tpu_custom_call.1} parent=5 // pred_region
        %s109 = ssub.s32 %s17, 1
      $region12: #{tpu_custom_call.1} parent=5 // pred_fallthru
        _
      %p110 = scmp.lt.s32.totalorder %s17, 2
      // Predicated region
      $region13: #{tpu_custom_call.1} parent=5 // pred_check
        %p111 = pneg %p110
      $region14: #{tpu_custom_call.1} parent=5 // pred_check_branch
        %113 = sbr.rel (%p111) target = $region16
      $region15: #{tpu_custom_call.1} parent=5 // pred_region
        // Predicated region
        $region17: #{tpu_custom_call.1} parent=15 // pred_check
          %p114 = pneg %p37
        $region18: #{tpu_custom_call.1} parent=15 // pred_check_branch
          %116 = sbr.rel (%p114) target = $region20
        $region19: #{tpu_custom_call.1} parent=15 // pred_region
          %s117 = sand.u32 %s27, 1
          %s118 = scalar_lea.sflag [#allocation3], %s117
          %s119 = sand.u32 %s27, 1
          %s120 = smul.addr %s119, 24
          %s121 = scalar_lea.vmem [#allocation2], %s120
          %s122 = smul.u32 3, %s17
          %s124 = ssub.s32 384, 384
          %125 = vsyncadd %s118, %s124
          %s126 = smul.addr %s122, 2
          %s127 = smul.addr %s126, 64
          %s128 = scalar_lea.hbm %s0, %s127
          %s129 = sshll.u32 %s121, 4
          %s130 = int_to_ptr.vmem [resolvable:$true] %s129
          %135 = dma.hbm_to_vmem [thread:$0]  %s128, 384, %s130, %s118, 128, 128, 8
        $region20: #{tpu_custom_call.1} parent=15 // pred_fallthru
          _
        // Predicated region
        $region21: #{tpu_custom_call.1} parent=15 // pred_check
          %p136 = pneg %p63
        $region22: #{tpu_custom_call.1} parent=15 // pred_check_branch
          %138 = sbr.rel (%p136) target = $region24
        $region23: #{tpu_custom_call.1} parent=15 // pred_region
          %s139 = sand.u32 %s53, 1
          %s140 = scalar_lea.sflag [#allocation6], %s139
          %s141 = sand.u32 %s53, 1
          %s142 = smul.addr %s141, 6
          %s143 = scalar_lea.vmem [#allocation5], %s142
          %s144 = smul.u32 3, %s17
          %s146 = ssub.s32 96, 96
          %147 = vsyncadd %s140, %s146
          %s148 = smul.addr %s144, 2
          %s149 = smul.addr %s148, 16
          %s150 = scalar_lea.hbm %s1, %s149
          %s151 = sshll.u32 %s143, 4
          %s152 = int_to_ptr.vmem [resolvable:$true] %s151
          %157 = dma.hbm_to_vmem [thread:$0]  %s150, 96, %s152, %s140, 32, 32, 2
        $region24: #{tpu_custom_call.1} parent=15 // pred_fallthru
          _
      $region16: #{tpu_custom_call.1} parent=5 // pred_fallthru
        _
      %p158 = scmp.le.s32.totalorder 1, %s17
      %p159 = scmp.lt.s32.totalorder %s17, 3
      %p160 = pnand %p158, %p159
      %p161 = pneg %p160
      // Predicated region
      $region25: #{tpu_custom_call.1} parent=5 // pred_check
        _
      $region26: #{tpu_custom_call.1} parent=5 // pred_check_branch
        %163 = sbr.rel (%p160) target = $region28
      $region27: #{tpu_custom_call.1} parent=5 // pred_region
        %s164 = ssub.s32 %s17, 1
        %s165 = sand.u32 %s30, 1
        %s166 = scalar_lea.sflag [#allocation3], %s165
        %s167 = sand.u32 %s30, 1
        %s168 = smul.addr %s167, 24
        %s169 = scalar_lea.vmem [#allocation2], %s168
        // Predicated region
        $region29: #{tpu_custom_call.1} parent=27 // pred_check
          %p170 = pneg %p43
        $region30: #{tpu_custom_call.1} parent=27 // pred_check_branch
          %172 = sbr.rel (%p170) target = $region32
        $region31: #{tpu_custom_call.1} parent=27 // pred_region
          %173 = dma.done %s166, 384
        $region32: #{tpu_custom_call.1} parent=27 // pred_fallthru
          _
        %s174 = sand.u32 %s56, 1
        %s175 = scalar_lea.sflag [#allocation6], %s174
        %s176 = sand.u32 %s56, 1
        %s177 = smul.addr %s176, 6
        %s178 = scalar_lea.vmem [#allocation5], %s177
        // Predicated region
        $region33: #{tpu_custom_call.1} parent=27 // pred_check
          %p179 = pneg %p69
        $region34: #{tpu_custom_call.1} parent=27 // pred_check_branch
          %181 = sbr.rel (%p179) target = $region36
        $region35: #{tpu_custom_call.1} parent=27 // pred_region
          %182 = dma.done %s175, 96
        $region36: #{tpu_custom_call.1} parent=27 // pred_fallthru
          _
        %s183 = sand.u32 %s30, 1
        %s184 = scalar_lea.sflag [#allocation3], %s183
        %s185 = sand.u32 %s30, 1
        %s186 = smul.addr %s185, 24
        %s187 = scalar_lea.vmem [#allocation2], %s186
        %p188 = pneg %p43
        %p189 = pneg %p40
        %s190 = sand.u32 %s56, 1
        %s191 = scalar_lea.sflag [#allocation6], %s190
        %s192 = sand.u32 %s56, 1
        %s193 = smul.addr %s192, 6
        %s194 = scalar_lea.vmem [#allocation5], %s193
        %p195 = pneg %p69
        %p196 = pneg %p66
        %p197 = pneg %p95
        %p198 = pneg %p92
        %s199 = sand.u32 %s82, 1
        %s200 = scalar_lea.sflag [#allocation4], %s199
        %s201 = sand.u32 %s82, 1
        %s202 = smul.addr %s201, 24
        %s203 = scalar_lea.vmem [#allocation7], %s202
        %s204 = smul.u32 3, %s22
        %s205 = smul.u32 3, %s22
        %s206 = smul.u32 3, %s22
        %v207 = vld [vmem:[%s169] sm:$0xff]
        %v208 = vld [vmem:[%s169 + $0x8] sm:$0xff]
        %v209 = vld [vmem:[%s169 + $0x10] sm:$0xff]
        %v210 = vld [vmem:[%s178] sm:$0x3]
        %v211 = vld [vmem:[%s178 + $0x2] sm:$0x3]
        %v212 = vld [vmem:[%s178 + $0x4] sm:$0x3]
        %v216 = vlaneseq
        %v217 = vshrl.u32 %v216, 7
        %v218 = vsub.s32 0, %v217
        %v219 = vrot.slane %v210, %v218
        %v220 = vlaneseq
        %v221 = vshrl.u32 %v220, 7
        %v222 = vsub.s32 1, %v221
        %v223 = vrot.slane %v210, %v222
        %v224 = vlaneseq
        %v225 = vshrl.u32 %v224, 7
        %v226 = vsub.s32 0, %v225
        %v227 = vrot.slane %v211, %v226
        %v228 = vlaneseq
        %v229 = vshrl.u32 %v228, 7
        %v230 = vsub.s32 1, %v229
        %v231 = vrot.slane %v211, %v230
        %v232 = vlaneseq
        %v233 = vshrl.u32 %v232, 7
        %v234 = vsub.s32 0, %v233
        %v235 = vrot.slane %v212, %v234
        %v236 = vlaneseq
        %v237 = vshrl.u32 %v236, 7
        %v238 = vsub.s32 1, %v237
        %v239 = vrot.slane %v212, %v238
        %v240 = vcombine.low %v219, %v223
        %v241 = vcombine.low %v227, %v231
        %v242 = vcombine.low %v235, %v239
        %v246 = vadd.f32 %v207, %v240
        %v247 = vadd.f32 %v208, %v241
        %v248 = vadd.f32 %v209, %v242
        %249 = vst [vmem:[%s203] sm:$0xff] %v246
        %250 = vst [vmem:[%s203 + $0x8] sm:$0xff] %v247
        %251 = vst [vmem:[%s203 + $0x10] sm:$0xff] %v248
        %s252 = sand.u32 %s82, 1
        %s253 = scalar_lea.sflag [#allocation4], %s252
        %s254 = sand.u32 %s82, 1
        %s255 = smul.addr %s254, 24
        %s256 = scalar_lea.vmem [#allocation7], %s255
        // Predicated region
        $region37: #{tpu_custom_call.1} parent=27 // pred_check
          %p257 = pneg %p92
        $region38: #{tpu_custom_call.1} parent=27 // pred_check_branch
          %259 = sbr.rel (%p257) target = $region40
        $region39: #{tpu_custom_call.1} parent=27 // pred_region
          %s260 = smul.u32 3, %s22
          %s262 = ssub.s32 384, 384
          %263 = vsyncadd %s253, %s262
          %s264 = smul.addr %s260, 2
          %s265 = smul.addr %s264, 64
          %s266 = scalar_lea.hbm %s2, %s265
          %s267 = sshll.u32 %s256, 4
          %s268 = int_to_ptr.vmem [resolvable:$true] %s267
          %273 = dma.vmem_to_hbm [thread:$0]  %s268, 384, %s266, %s253, 128, 128, 8
        $region40: #{tpu_custom_call.1} parent=27 // pred_fallthru
          _
      $region28: #{tpu_custom_call.1} parent=5 // pred_fallthru
        _
      %p274 = scmp.le.s32.totalorder 2, %s17
      // Predicated region
      $region41: #{tpu_custom_call.1} parent=5 // pred_check
        %p275 = pneg %p274
      $region42: #{tpu_custom_call.1} parent=5 // pred_check_branch
        %277 = sbr.rel (%p275) target = $region44
      $region43: #{tpu_custom_call.1} parent=5 // pred_region
        %s278 = ssub.s32 %s17, 2
        // Predicated region
        $region45: #{tpu_custom_call.1} parent=43 // pred_check
          %p279 = pneg %p98
        $region46: #{tpu_custom_call.1} parent=43 // pred_check_branch
          %281 = sbr.rel (%p279) target = $region48
        $region47: #{tpu_custom_call.1} parent=43 // pred_region
          %s282 = sand.u32 %s83, 1
          %s283 = scalar_lea.sflag [#allocation4], %s282
          %s284 = sand.u32 %s83, 1
          %s285 = smul.addr %s284, 24
          %s286 = scalar_lea.vmem [#allocation7], %s285
          %287 = dma.done %s283, 384
        $region48: #{tpu_custom_call.1} parent=43 // pred_fallthru
          _
      $region44: #{tpu_custom_call.1} parent=5 // pred_fallthru
        _
    $region6: #{tpu_custom_call.1} parent=1 // loop_footer
      %s21 = sadd.s32 1, %s17
    $region7: #{tpu_custom_call.1} parent=1 // loop_footer_branch
      %16 = sbr.rel target = $region3
    $region8: #{tpu_custom_call.1} parent=1 // loop_exit
      _
    %288 = vsyncpa [#allocation3], 1
    %s289 = scalar_lea.sflag [#allocation3], 1
    %290 = vsyncpa %s289, 1
    %291 = vsyncpa [#allocation6], 1
    %s292 = scalar_lea.sflag [#allocation6], 1
    %293 = vsyncpa %s292, 1
    %294 = vsyncpa [#allocation4], 1
    %s295 = scalar_lea.sflag [#allocation4], 1
    %296 = vsyncpa %s295, 1

</llo_original>
